<compile_context>
chip_gen: v6e
topology: v6e:2x2x1
jax: 0.10.0
libtpu: 0.0.40
codegen_flags: <defaults>
</compile_context>

<pallas_src>
import functools
import math

import jax
import jax.numpy as jnp
import numpy as np
from jax import lax
from jax.experimental import pallas as pl
from jax.experimental.pallas import tpu as pltpu


_LANE = 128                 # vreg lane count: store granularity on the last dim
_SUBLANE = 8                # f32 sublanes per vreg: disparity-plane store group
_MAX_TILE_LANES = 8192      # cap on per-step lane extent (code size / liveness)
_MXU_REDUCE_MIN_C = 8       # below one sublane tile the XLU reduce is ~free


def _corr1d_kernel(fl_ref, fr_ref, out_ref, *, D, stride, w, group):
    """One grid step.

    fl_ref / fr_ref: (c, LT) VMEM tiles of the flattened (h*w [+pad]) lane axis.
    Tile boundaries are image-row aligned (or cover the whole padded image), so
    x - d*stride never crosses a tile boundary for unmasked positions.
    out_ref: (D, LT).

      corr[d, y*w + x] = sum_c fL[c,y,x] * fR[c,y,x - d*stride]   if x >= d*stride
                       = 0                                        otherwise
    """
    c, lt = fl_ref.shape
    # Global flat offset of this tile -> exact column-within-row per lane.
    base = pl.program_id(1) * lt
    col = (lax.broadcasted_iota(jnp.int32, (1, lt), 1) + base) % w

    use_mxu = c >= _MXU_REDUCE_MIN_C
    ones = jnp.ones((1, c), dtype=fl_ref.dtype) if use_mxu else None

    for g0 in range(0, D, group):
        g = min(group, D - g0)

        # Planes with idx >= w are statically zero (PyTorch's break / empty slice).
        if g0 >= w or g0 * stride >= w:
            out_ref[pl.ds(g0, g), :] = jnp.zeros((g, lt), out_ref.dtype)
            continue

        sims = []
        for d in range(g0, g0 + g):
            idx = d * stride
            if d >= w or idx >= w:
                sims.append(jnp.zeros((1, lt), jnp.float32))
                continue
            # Per-iteration ref reads: VMEM loads are cheap (3 vld slots) and this
            # keeps vreg liveness bounded across the unrolled disparity loop.
            fr = fr_ref[...]
            if idx > 0:
                # XLU lane rotate toward higher index: shifted[.., x] = fr[.., x-idx].
                # Wrapped positions (col < idx) are masked below.
                fr = pltpu.roll(fr, shift=idx, axis=1)
            prod = fl_ref[...] * fr
            if use_mxu:
                # Channel reduce on the MXU (vex slot) instead of the XLU.
                sims.append(jnp.dot(ones, prod, preferred_element_type=jnp.float32))
            else:
                sims.append(jnp.sum(prod, axis=0, keepdims=True, dtype=jnp.float32))

        blk = jnp.concatenate(sims, axis=0) if g > 1 else sims[0]
        d_idx = g0 + lax.broadcasted_iota(jnp.int32, (g, lt), 0)
        valid = col >= d_idx * stride
        # One grouped multi-sublane store per `group` planes (not D row stores).
        out_ref[pl.ds(g0, g), :] = jnp.where(valid, blk, 0.0).astype(out_ref.dtype)


def _vmem_budget():
    """(tile budget bytes, vmem_limit_bytes or None) -- generation aware."""
    try:
        kind = jax.devices()[0].device_kind.lower()
    except Exception:
        kind = ""
    if "v7" in kind or "7x" in kind:
        # 64 MiB VMEM per TensorCore: stay well clear of it.
        return 28 << 20, 44 << 20
    if "v6" in kind or "v5" in kind:
        # 128 MiB physical; only the scoped default (16/32 MiB) needs raising.
        return 48 << 20, 96 << 20
    # Unknown chip (v4 / interpreter): stay under every default scoped limit.
    return 10 << 20, None


def _choose_tile(c, h, w, D, dtype, budget_bytes, bn):
    """Pick (nt, LT, L_pad): nt tiles of LT flattened lanes; inputs padded to L_pad.

    Tiles start on image-row boundaries (the roll never needs a neighbouring tile)
    and have LT % 128 == 0 (lane-dense, unmasked loads/stores).
    """
    itemsize = jnp.dtype(dtype).itemsize
    L = h * w
    # Double-buffered inputs + double-buffered output, per lane column of a tile.
    per_lane = 2 * (2 * c * itemsize) + 2 * (D * itemsize)

    step = _LANE // math.gcd(w, _LANE)  # smallest row count with rows*w % 128 == 0
    if step <= h:
        th_cap = -(-h // step) * step
        th_budget = max(step, (budget_bytes // (per_lane * w)) // step * step)
        th_lanes = max(step, (_MAX_TILE_LANES // w) // step * step)
        th = min(th_cap, th_budget, th_lanes)
        if bn == 1 and th >= th_cap and h > step:
            # Single-image call: force >= 2 grid steps so a v7x megacore can use
            # both TensorCores under the "parallel" dimension semantics.
            th = min(th, -(-h // (2 * step)) * step)
        h_pad = -(-h // th) * th
        return h_pad // th, th * w, h_pad * w

    # Rows too short to lane-align: whole (tail-padded) image as a single tile.
    # TODO(synk): tile + halo (or the MXU Gram form) for huge c*h*w at tiny h.
    lt = -(-L // _LANE) * _LANE
    return 1, lt, lt


def corr1d(fL, fR, *, kernel_size=1, stride=1, D=1):
    """Forward pass of Corr1d (default simfun) on TPU via Pallas."""
    assert fL.shape == fR.shape and fL.ndim == 4
    bn, c, h, w = fL.shape
    L = h * w

    budget, vmem_limit = _vmem_budget()
    nt, LT, L_pad = _choose_tile(c, h, w, D, fL.dtype, budget, bn)

    # Lane-dense flattened view; tail-pad so every tile is a full 128-lane multiple
    # (unmasked vst is the single biggest measured layout lever).
    fl2 = fL.reshape(bn, c, L)
    fr2 = fR.reshape(bn, c, L)
    if L_pad != L:
        pad = ((0, 0), (0, 0), (0, L_pad - L))
        fl2 = jnp.pad(fl2, pad)
        fr2 = jnp.pad(fr2, pad)

    # 8 f32 / 16 bf16 disparity planes per store group == one full sublane tile.
    group = 16 if jnp.dtype(fL.dtype).itemsize == 2 else _SUBLANE
    kernel = functools.partial(_corr1d_kernel, D=D, stride=stride, w=w, group=group)

    cparams = {"dimension_semantics": ("parallel", "parallel")}
    if vmem_limit is not None:
        cparams["vmem_limit_bytes"] = int(vmem_limit)

    out_flat = pl.pallas_call(
        kernel,
        out_shape=jax.ShapeDtypeStruct((bn, D, L_pad), fL.dtype),
        grid=(bn, nt),
        in_specs=[
            pl.BlockSpec((None, c, LT), lambda b, t: (b, 0, t)),
            pl.BlockSpec((None, c, LT), lambda b, t: (b, 0, t)),
        ],
        out_specs=pl.BlockSpec((None, D, LT), lambda b, t: (b, 0, t)),
        compiler_params=pltpu.CompilerParams(**cparams),
    )(fl2, fr2)

    corrmap = out_flat[..., :L].reshape(bn, D, h, w)

    if kernel_size > 1:
        # nn.AvgPool2d(kernel_size, stride=1, padding=k//2), count_include_pad=True.
        # TODO(synk): plain-JAX glue (not a Pallas kernel); the hot path is above.
        assert kernel_size % 2 == 1
        p = kernel_size // 2
        summed = lax.reduce_window(
            corrmap.astype(jnp.float32), 0.0, lax.add,
            window_dimensions=(1, 1, kernel_size, kernel_size),
            window_strides=(1, 1, 1, 1),
            padding=[(0, 0), (0, 0), (p, p), (p, p)],
        )
        corrmap = (summed / float(kernel_size * kernel_size)).astype(fL.dtype)

    return corrmap


def _corr1d_reference(fL, fR, *, stride=1, D=1):
    """Pure-numpy re-implementation of the PyTorch forward (kernel_size=1)."""
    fL = np.asarray(fL, dtype=np.float32)
    fR = np.asarray(fR, dtype=np.float32)
    bn, c, h, w = fL.shape
    corr = np.zeros((bn, D, h, w), dtype=np.float32)
    corr[:, 0] = (fL * fR).sum(axis=1)
    for i in range(1, D):
        if i >= w:
            break
        idx = i * stride
        if idx >= w:
            continue
        corr[:, i, :, idx:] = (fL[:, :, :, idx:] * fR[:, :, :, : w - idx]).sum(axis=1)
    return corr


def _run_case(key, bn, c, h, w, D, stride):
    kL, kR = jax.random.split(key)
    fL = jax.random.normal(kL, (bn, c, h, w), dtype=jnp.float32)
    fR = jax.random.normal(kR, (bn, c, h, w), dtype=jnp.float32)
    out = corr1d(fL, fR, kernel_size=1, stride=stride, D=D)
    out = jax.block_until_ready(out)
    ref = _corr1d_reference(fL, fR, stride=stride, D=D)
    np.testing.assert_allclose(np.asarray(out), ref, rtol=1e-5, atol=1e-5)


if __name__ == "__main__":
    key = jax.random.PRNGKey(0)
    k1, k2, k3 = jax.random.split(key, 3)

    # Module-default-like case (row-aligned tiling, no padding).
    _run_case(k1, bn=2, c=4, h=16, w=16, D=4, stride=1)
    # w not a multiple of 128 / stride > 1 (whole-image tile + lane padding).
    _run_case(k2, bn=1, c=3, h=8, w=20, D=6, stride=2)
    # Disparity planes with idx >= w (statically-zero planes path).
    _run_case(k3, bn=2, c=4, h=8, w=8, D=6, stride=2)

    print("KERNEL_OK")
</pallas_src>

<mosaic_0001>
module attributes {stable_mosaic.version = 11 : i64} {
  func.func @_corr1d_kernel(%arg0: i32, %arg1: i32, %arg2: memref<1x4x256xf32, #tpu.memory_space<vmem>>, %arg3: memref<1x4x256xf32, #tpu.memory_space<vmem>>, %arg4: memref<1x4x256xf32, #tpu.memory_space<vmem>>) attributes {dimension_semantics = [#tpu.dimension_semantics<parallel>, #tpu.dimension_semantics<parallel>], iteration_bounds = array<i64: 2, 1>, scalar_prefetch = 0 : i64, scratch_operands = 0 : i64, tpu.core_type = #tpu.core_type<tc>, window_params = [{transform_indices = @transform_0, window_bounds = array<i64: 1, 4, 256>}, {transform_indices = @transform_1, window_bounds = array<i64: 1, 4, 256>}, {transform_indices = @transform_2, window_bounds = array<i64: 1, 4, 256>}]} {
    %c256_i32 = arith.constant 256 : i32
    %0 = arith.muli %arg1, %c256_i32 : i32
    %1 = tpu.iota {dimensions = array<i32: 1>} : vector<1x256xi32>
    %2 = vector.broadcast %0 : i32 to vector<1x256xi32>
    %3 = arith.addi %1, %2 : vector<1x256xi32>
    %c16_i32 = arith.constant 16 : i32
    %c0_i32 = arith.constant 0 : i32
    %4 = arith.cmpi eq, %c16_i32, %c0_i32 : i32
    %c1_i32 = arith.constant 1 : i32
    %5 = arith.select %4, %c1_i32, %c16_i32 : i32
    %6 = vector.broadcast %5 : i32 to vector<1x256xi32>
    %7 = arith.remsi %3, %6 : vector<1x256xi32>
    %c0_i32_0 = arith.constant 0 : i32
    %8 = vector.broadcast %c0_i32_0 : i32 to vector<1x256xi32>
    %9 = arith.cmpi ne, %7, %8 : vector<1x256xi32>
    %c0_i32_1 = arith.constant 0 : i32
    %10 = vector.broadcast %c0_i32_1 : i32 to vector<1x256xi32>
    %11 = arith.cmpi slt, %7, %10 : vector<1x256xi32>
    %c0_i32_2 = arith.constant 0 : i32
    %12 = arith.cmpi slt, %5, %c0_i32_2 : i32
    %13 = vector.broadcast %12 : i1 to vector<1x256xi1>
    %14 = vector.broadcast %13 : vector<1x256xi1> to vector<1x256xi1>
    %15 = arith.xori %11, %14 : vector<1x256xi1>
    %16 = arith.andi %15, %9 : vector<1x256xi1>
    %17 = vector.broadcast %5 : i32 to vector<1x256xi32>
    %18 = arith.addi %7, %17 : vector<1x256xi32>
    %19 = arith.select %16, %18, %7 : vector<1x256xi1>, vector<1x256xi32>
    %c0 = arith.constant 0 : index
    %c0_3 = arith.constant 0 : index
    %c0_4 = arith.constant 0 : index
    %20 = vector.load %arg3[%c0, %c0_3, %c0_4] : memref<1x4x256xf32, #tpu.memory_space<vmem>>, vector<1x4x256xf32>
    %21 = vector.shape_cast %20 : vector<1x4x256xf32> to vector<4x256xf32>
    %c0_5 = arith.constant 0 : index
    %c0_6 = arith.constant 0 : index
    %c0_7 = arith.constant 0 : index
    %22 = vector.load %arg2[%c0_5, %c0_6, %c0_7] : memref<1x4x256xf32, #tpu.memory_space<vmem>>, vector<1x4x256xf32>
    %23 = vector.shape_cast %22 : vector<1x4x256xf32> to vector<4x256xf32>
    %24 = arith.mulf %23, %21 : vector<4x256xf32>
    %cst = arith.constant dense<0.000000e+00> : vector<256xf32>
    %25 = vector.multi_reduction <add>, %24, %cst [0] : vector<4x256xf32> to vector<256xf32>
    %26 = vector.shape_cast %25 : vector<256xf32> to vector<1x256xf32>
    %c0_8 = arith.constant 0 : index
    %c0_9 = arith.constant 0 : index
    %c0_10 = arith.constant 0 : index
    %27 = vector.load %arg3[%c0_8, %c0_9, %c0_10] : memref<1x4x256xf32, #tpu.memory_space<vmem>>, vector<1x4x256xf32>
    %28 = vector.shape_cast %27 : vector<1x4x256xf32> to vector<4x256xf32>
    %c1_i32_11 = arith.constant 1 : i32
    %29 = tpu.dynamic_rotate %28 by %c1_i32_11 dim 1 : vector<4x256xf32>, i32 -> vector<4x256xf32>
    %c0_12 = arith.constant 0 : index
    %c0_13 = arith.constant 0 : index
    %c0_14 = arith.constant 0 : index
    %30 = vector.load %arg2[%c0_12, %c0_13, %c0_14] : memref<1x4x256xf32, #tpu.memory_space<vmem>>, vector<1x4x256xf32>
    %31 = vector.shape_cast %30 : vector<1x4x256xf32> to vector<4x256xf32>
    %32 = arith.mulf %31, %29 : vector<4x256xf32>
    %cst_15 = arith.constant dense<0.000000e+00> : vector<256xf32>
    %33 = vector.multi_reduction <add>, %32, %cst_15 [0] : vector<4x256xf32> to vector<256xf32>
    %34 = vector.shape_cast %33 : vector<256xf32> to vector<1x256xf32>
    %c0_16 = arith.constant 0 : index
    %c0_17 = arith.constant 0 : index
    %c0_18 = arith.constant 0 : index
    %35 = vector.load %arg3[%c0_16, %c0_17, %c0_18] : memref<1x4x256xf32, #tpu.memory_space<vmem>>, vector<1x4x256xf32>
    %36 = vector.shape_cast %35 : vector<1x4x256xf32> to vector<4x256xf32>
    %c2_i32 = arith.constant 2 : i32
    %37 = tpu.dynamic_rotate %36 by %c2_i32 dim 1 : vector<4x256xf32>, i32 -> vector<4x256xf32>
    %c0_19 = arith.constant 0 : index
    %c0_20 = arith.constant 0 : index
    %c0_21 = arith.constant 0 : index
    %38 = vector.load %arg2[%c0_19, %c0_20, %c0_21] : memref<1x4x256xf32, #tpu.memory_space<vmem>>, vector<1x4x256xf32>
    %39 = vector.shape_cast %38 : vector<1x4x256xf32> to vector<4x256xf32>
    %40 = arith.mulf %39, %37 : vector<4x256xf32>
    %cst_22 = arith.constant dense<0.000000e+00> : vector<256xf32>
    %41 = vector.multi_reduction <add>, %40, %cst_22 [0] : vector<4x256xf32> to vector<256xf32>
    %42 = vector.shape_cast %41 : vector<256xf32> to vector<1x256xf32>
    %c0_23 = arith.constant 0 : index
    %c0_24 = arith.constant 0 : index
    %c0_25 = arith.constant 0 : index
    %43 = vector.load %arg3[%c0_23, %c0_24, %c0_25] : memref<1x4x256xf32, #tpu.memory_space<vmem>>, vector<1x4x256xf32>
    %44 = vector.shape_cast %43 : vector<1x4x256xf32> to vector<4x256xf32>
    %c3_i32 = arith.constant 3 : i32
    %45 = tpu.dynamic_rotate %44 by %c3_i32 dim 1 : vector<4x256xf32>, i32 -> vector<4x256xf32>
    %c0_26 = arith.constant 0 : index
    %c0_27 = arith.constant 0 : index
    %c0_28 = arith.constant 0 : index
    %46 = vector.load %arg2[%c0_26, %c0_27, %c0_28] : memref<1x4x256xf32, #tpu.memory_space<vmem>>, vector<1x4x256xf32>
    %47 = vector.shape_cast %46 : vector<1x4x256xf32> to vector<4x256xf32>
    %48 = arith.mulf %47, %45 : vector<4x256xf32>
    %cst_29 = arith.constant dense<0.000000e+00> : vector<256xf32>
    %49 = vector.multi_reduction <add>, %48, %cst_29 [0] : vector<4x256xf32> to vector<256xf32>
    %50 = vector.shape_cast %49 : vector<256xf32> to vector<1x256xf32>
    %51 = tpu.concatenate %26, %34, %42, %50 in 0 : vector<1x256xf32>, vector<1x256xf32>, vector<1x256xf32>, vector<1x256xf32> -> vector<4x256xf32>
    %52 = tpu.iota {dimensions = array<i32: 0>} : vector<4x256xi32>
    %c0_i32_30 = arith.constant 0 : i32
    %53 = vector.broadcast %c0_i32_30 : i32 to vector<4x256xi32>
    %54 = arith.addi %53, %52 : vector<4x256xi32>
    %c1_i32_31 = arith.constant 1 : i32
    %55 = vector.broadcast %c1_i32_31 : i32 to vector<4x256xi32>
    %56 = arith.muli %54, %55 : vector<4x256xi32>
    %57 = vector.broadcast %19 : vector<1x256xi32> to vector<4x256xi32>
    %58 = arith.cmpi sge, %57, %56 : vector<4x256xi32>
    %cst_32 = arith.constant 0.000000e+00 : f32
    %59 = vector.broadcast %cst_32 : f32 to vector<4x256xf32>
    %60 = arith.select %58, %51, %59 : vector<4x256xi1>, vector<4x256xf32>
    %c0_33 = arith.constant 0 : index
    %c0_34 = arith.constant 0 : index
    %c0_35 = arith.constant 0 : index
    %61 = vector.load %arg4[%c0_33, %c0_34, %c0_35] : memref<1x4x256xf32, #tpu.memory_space<vmem>>, vector<1x4x256xf32>
    %62 = vector.shape_cast %61 : vector<1x4x256xf32> to vector<4x256xf32>
    %63 = vector.shape_cast %60 : vector<4x256xf32> to vector<1x4x256xf32>
    tpu.vector_store %arg4[%c0_33, %c0_34, %c0_35], %63 {strides = array<i32>} : memref<1x4x256xf32, #tpu.memory_space<vmem>>, vector<1x4x256xf32>,
    return
  }
  func.func @transform_0(%arg0: i32, %arg1: i32) -> (i32, i32, i32) {
    %c0_i32 = arith.constant 0 : i32
    %c0_i32_0 = arith.constant 0 : i32
    return %arg0, %c0_i32, %arg1 : i32, i32, i32
  }
  func.func @transform_1(%arg0: i32, %arg1: i32) -> (i32, i32, i32) {
    %c0_i32 = arith.constant 0 : i32
    %c0_i32_0 = arith.constant 0 : i32
    return %arg0, %c0_i32, %arg1 : i32, i32, i32
  }
  func.func @transform_2(%arg0: i32, %arg1: i32) -> (i32, i32, i32) {
    %c0_i32 = arith.constant 0 : i32
    %c0_i32_0 = arith.constant 0 : i32
    return %arg0, %c0_i32, %arg1 : i32, i32, i32
  }
}

</mosaic_0001>

<llo_original>
// kernel: tpu_custom_call.1
$region0: #{tpu_custom_call.1}
  #allocation0 [shape = 'u32[]', space=smem, size = 0x4, offset = 0x4, fixed_abs, tag = 'smem constant byte address 0x4 - core index']
  #allocation1 [shape = 'u32[144,128]{1,0:T(1,128)}', space=vmem, size = 0x12000, scoped, tag = 'internal scratch']
  %s0 = inlined_call_operand.hbm [shape: f32[2,4,256], index: 0, kind: input, shape index: {}]
  %s1 = inlined_call_operand.hbm [shape: f32[2,4,256], index: 1, kind: input, shape index: {}]
  %s2 = inlined_call_operand.hbm [shape: f32[2,4,256], index: 2, kind: output, shape index: {}]
  %s3 = sld [smem:[#allocation0]]
  $region49: #{tpu_custom_call.1} parent=0
    _
  %s5 = ssub.s32 1, %s3
  %s6 = scalar_select 0, %s5, %s3
  $region1: #{tpu_custom_call.1} parent=0
    #allocation2 [shape = 'u8[8192]{0}', space=vmem, size = 0x2000, scoped, tag = 'input window, operand 0']
    #allocation3 [shape = 's32[2]{0}', space=sflag, size = 0x8, scoped, tag = 'scoped memory for tpu_custom_call.1']
    #allocation4 [shape = 's32[2]{0}', space=sflag, size = 0x8, scoped, tag = 'scoped memory for tpu_custom_call.1']
    #allocation5 [shape = 'u8[8192]{0}', space=vmem, size = 0x2000, scoped, tag = 'input window, operand 1']
    #allocation6 [shape = 's32[2]{0}', space=sflag, size = 0x8, scoped, tag = 'scoped memory for tpu_custom_call.1']
    #allocation7 [shape = 'u8[8192]{0}', space=vmem, size = 0x2000, scoped, tag = 'output window, operand 0']
    %7 = vsyncpa [#allocation3], 0
    %s8 = scalar_lea.sflag [#allocation3], 1
    %9 = vsyncpa %s8, 0
    %10 = vsyncpa [#allocation6], 0
    %s11 = scalar_lea.sflag [#allocation6], 1
    %12 = vsyncpa %s11, 0
    %13 = vsyncpa [#allocation4], 0
    %s14 = scalar_lea.sflag [#allocation4], 1
    %15 = vsyncpa %s14, 0
    loop: start=0, step=1, limit=4
    $region2: #{tpu_custom_call.1} parent=1 // loop_pre_header
      _
    $region3: #{tpu_custom_call.1} parent=1 // loop_header
      %s17 = sphi 0, %s21
      %p18 = scmp.ge.s32.totalorder %s17, 4
      %s24 = sphi 0, %s36
      %s25 = sphi 0, %s32
      %s26 = sphi 0, %s24
      %s27 = sphi 0, %s25
      %s28 = sphi 0, %s26
      %s29 = sphi 0, %s27
      %s41 = sphi 0, %s43
      %s44 = sphi 0, %s41
      %s45 = sphi 0, %s44
      %s61 = sphi 0, %s45
      %s69 = sphi 0, %s71
      %s72 = sphi 0, %s69
      %s73 = sphi 0, %s72
      %s89 = sphi 0, %s73
      %s97 = sphi 0, %s99
      %s100 = sphi 0, %s97
      %s101 = sphi 0, %s100
      %s117 = sphi 0, %s101
    $region4: #{tpu_custom_call.1} parent=1 // loop_header_branch
      %20 = sbr.rel (%p18) target = $region8
    $region5: #{tpu_custom_call.1} parent=1 // loop_body
      %s22 = ssub.s32 %s17, 1
      %s23 = ssub.s32 %s17, 2
      %s30 = sadd.s32 1, %s25
      %p31 = scmp.ge.s32.totalorder %s30, 1
      %s32 = scalar_select %p31, 0, %s30
      %s33 = sadd.s32 1, %s24
      %s34 = scalar_select %p31, %s33, %s24
      %p35 = scmp.ge.s32.totalorder %s34, 2
      %s36 = scalar_select %p35, 0, %s34
      %s37 = ssub.s32 %s24, %s36
      %s38 = ssub.s32 %s25, %s32
      %s39 = sor.u32 %s37, %s38
      %p40 = scmp.eq.s32.totalorder %s39, 0
      %s42 = sadd.s32 %s41, 1
      %s43 = scalar_select %p40, %s41, %s42
      %p46 = pneg %p40
      %p47 = scmp.eq.s32.totalorder %s17, 1
      %p48 = por %p46, %p47
      %p49 = scmp.ne.s32.totalorder %s41, %s44
      %p50 = scmp.eq.s32.totalorder %s17, 0
      %p51 = por %p49, %p50
      %p52 = scmp.ne.s32.totalorder %s41, %s44
      %p53 = scmp.eq.s32.totalorder %s22, 1
      %p54 = por %p52, %p53
      %p55 = scmp.ne.s32.totalorder %s44, %s45
      %p56 = scmp.eq.s32.totalorder %s22, 0
      %p57 = por %p55, %p56
      %p58 = scmp.ne.s32.totalorder %s44, %s45
      %p59 = scmp.eq.s32.totalorder %s23, 1
      %p60 = por %p58, %p59
      %p62 = scmp.ne.s32.totalorder %s45, %s61
      %p63 = scmp.eq.s32.totalorder %s23, 0
      %p64 = por %p62, %p63
      %s65 = ssub.s32 %s24, %s36
      %s66 = ssub.s32 %s25, %s32
      %s67 = sor.u32 %s65, %s66
      %p68 = scmp.eq.s32.totalorder %s67, 0
      %s70 = sadd.s32 %s69, 1
      %s71 = scalar_select %p68, %s69, %s70
      %p74 = pneg %p68
      %p75 = scmp.eq.s32.totalorder %s17, 1
      %p76 = por %p74, %p75
      %p77 = scmp.ne.s32.totalorder %s69, %s72
      %p78 = scmp.eq.s32.totalorder %s17, 0
      %p79 = por %p77, %p78
      %p80 = scmp.ne.s32.totalorder %s69, %s72
      %p81 = scmp.eq.s32.totalorder %s22, 1
      %p82 = por %p80, %p81
      %p83 = scmp.ne.s32.totalorder %s72, %s73
      %p84 = scmp.eq.s32.totalorder %s22, 0
      %p85 = por %p83, %p84
      %p86 = scmp.ne.s32.totalorder %s72, %s73
      %p87 = scmp.eq.s32.totalorder %s23, 1
      %p88 = por %p86, %p87
      %p90 = scmp.ne.s32.totalorder %s73, %s89
      %p91 = scmp.eq.s32.totalorder %s23, 0
      %p92 = por %p90, %p91
      %s93 = ssub.s32 %s24, %s36
      %s94 = ssub.s32 %s25, %s32
      %s95 = sor.u32 %s93, %s94
      %p96 = scmp.eq.s32.totalorder %s95, 0
      %s98 = sadd.s32 %s97, 1
      %s99 = scalar_select %p96, %s97, %s98
      %p102 = pneg %p96
      %p103 = scmp.eq.s32.totalorder %s17, 1
      %p104 = por %p102, %p103
      %p105 = scmp.ne.s32.totalorder %s97, %s100
      %p106 = scmp.eq.s32.totalorder %s17, 0
      %p107 = por %p105, %p106
      %p108 = scmp.ne.s32.totalorder %s97, %s100
      %p109 = scmp.eq.s32.totalorder %s22, 1
      %p110 = por %p108, %p109
      %p111 = scmp.ne.s32.totalorder %s100, %s101
      %p112 = scmp.eq.s32.totalorder %s22, 0
      %p113 = por %p111, %p112
      %p114 = scmp.ne.s32.totalorder %s100, %s101
      %p115 = scmp.eq.s32.totalorder %s23, 1
      %p116 = por %p114, %p115
      %p118 = scmp.ne.s32.totalorder %s101, %s117
      %p119 = scmp.eq.s32.totalorder %s23, 0
      %p120 = por %p118, %p119
      %p121 = scmp.le.s32.totalorder 1, %s17
      %p122 = scmp.lt.s32.totalorder %s17, 3
      %p123 = pnand %p121, %p122
      %p124 = pneg %p123
      // Predicated region
      $region9: #{tpu_custom_call.1} parent=5 // pred_check
        _
      $region10: #{tpu_custom_call.1} parent=5 // pred_check_branch
        %126 = sbr.rel (%p123) target = $region12
      $region11: #{tpu_custom_call.1} parent=5 // pred_region
        %s127 = ssub.s32 %s17, 1
      $region12: #{tpu_custom_call.1} parent=5 // pred_fallthru
        _
      %p128 = scmp.lt.s32.totalorder %s17, 2
      // Predicated region
      $region13: #{tpu_custom_call.1} parent=5 // pred_check
        %p129 = pneg %p128
      $region14: #{tpu_custom_call.1} parent=5 // pred_check_branch
        %131 = sbr.rel (%p129) target = $region16
      $region15: #{tpu_custom_call.1} parent=5 // pred_region
        // Predicated region
        $region17: #{tpu_custom_call.1} parent=15 // pred_check
          %p132 = pneg %p51
        $region18: #{tpu_custom_call.1} parent=15 // pred_check_branch
          %134 = sbr.rel (%p132) target = $region20
        $region19: #{tpu_custom_call.1} parent=15 // pred_region
          %s135 = sand.u32 %s41, 1
          %s136 = scalar_lea.sflag [#allocation3], %s135
          %s137 = sand.u32 %s41, 1
          %s138 = smul.addr %s137, 8
          %s139 = scalar_lea.vmem [#allocation2], %s138
          %s140 = smul.u32 2, %s25
          %s142 = ssub.s32 128, 128
          %143 = vsyncadd %s136, %s142
          %s144 = smul.addr %s24, 2
          %s145 = sadd.s32 %s140, %s144
          %s146 = smul.addr %s145, 64
          %s147 = scalar_lea.hbm %s0, %s146
          %s149 = sshll.u32 %s139, 4
          %s150 = int_to_ptr.vmem [resolvable:$true] %s149
          %152 = dma.hbm_to_vmem [thread:$0]  %s147, 128, %s150, %s136
        $region20: #{tpu_custom_call.1} parent=15 // pred_fallthru
          _
        // Predicated region
        $region21: #{tpu_custom_call.1} parent=15 // pred_check
          %p153 = pneg %p79
        $region22: #{tpu_custom_call.1} parent=15 // pred_check_branch
          %155 = sbr.rel (%p153) target = $region24
        $region23: #{tpu_custom_call.1} parent=15 // pred_region
          %s156 = sand.u32 %s69, 1
          %s157 = scalar_lea.sflag [#allocation6], %s156
          %s158 = sand.u32 %s69, 1
          %s159 = smul.addr %s158, 8
          %s160 = scalar_lea.vmem [#allocation5], %s159
          %s161 = smul.u32 2, %s25
          %s163 = ssub.s32 128, 128
          %164 = vsyncadd %s157, %s163
          %s165 = smul.addr %s24, 2
          %s166 = sadd.s32 %s161, %s165
          %s167 = smul.addr %s166, 64
          %s168 = scalar_lea.hbm %s1, %s167
          %s170 = sshll.u32 %s160, 4
          %s171 = int_to_ptr.vmem [resolvable:$true] %s170
          %173 = dma.hbm_to_vmem [thread:$0]  %s168, 128, %s171, %s157
        $region24: #{tpu_custom_call.1} parent=15 // pred_fallthru
          _
      $region16: #{tpu_custom_call.1} parent=5 // pred_fallthru
        _
      %p174 = scmp.le.s32.totalorder 1, %s17
      %p175 = scmp.lt.s32.totalorder %s17, 3
      %p176 = pnand %p174, %p175
      %p177 = pneg %p176
      // Predicated region
      $region25: #{tpu_custom_call.1} parent=5 // pred_check
        _
      $region26: #{tpu_custom_call.1} parent=5 // pred_check_branch
        %179 = sbr.rel (%p176) target = $region28
      $region27: #{tpu_custom_call.1} parent=5 // pred_region
        %s180 = ssub.s32 %s17, 1
        %s181 = sand.u32 %s44, 1
        %s182 = scalar_lea.sflag [#allocation3], %s181
        %s183 = sand.u32 %s44, 1
        %s184 = smul.addr %s183, 8
        %s185 = scalar_lea.vmem [#allocation2], %s184
        // Predicated region
        $region29: #{tpu_custom_call.1} parent=27 // pred_check
          %p186 = pneg %p57
        $region30: #{tpu_custom_call.1} parent=27 // pred_check_branch
          %188 = sbr.rel (%p186) target = $region32
        $region31: #{tpu_custom_call.1} parent=27 // pred_region
          %189 = dma.done %s182, 128
        $region32: #{tpu_custom_call.1} parent=27 // pred_fallthru
          _
        %s190 = sand.u32 %s72, 1
        %s191 = scalar_lea.sflag [#allocation6], %s190
        %s192 = sand.u32 %s72, 1
        %s193 = smul.addr %s192, 8
        %s194 = scalar_lea.vmem [#allocation5], %s193
        // Predicated region
        $region33: #{tpu_custom_call.1} parent=27 // pred_check
          %p195 = pneg %p85
        $region34: #{tpu_custom_call.1} parent=27 // pred_check_branch
          %197 = sbr.rel (%p195) target = $region36
        $region35: #{tpu_custom_call.1} parent=27 // pred_region
          %198 = dma.done %s191, 128
        $region36: #{tpu_custom_call.1} parent=27 // pred_fallthru
          _
        %s199 = sand.u32 %s44, 1
        %s200 = scalar_lea.sflag [#allocation3], %s199
        %s201 = sand.u32 %s44, 1
        %s202 = smul.addr %s201, 8
        %s203 = scalar_lea.vmem [#allocation2], %s202
        %p204 = pneg %p57
        %p205 = pneg %p54
        %s206 = sand.u32 %s72, 1
        %s207 = scalar_lea.sflag [#allocation6], %s206
        %s208 = sand.u32 %s72, 1
        %s209 = smul.addr %s208, 8
        %s210 = scalar_lea.vmem [#allocation5], %s209
        %p211 = pneg %p85
        %p212 = pneg %p82
        %p213 = pneg %p113
        %p214 = pneg %p110
        %s215 = sand.u32 %s100, 1
        %s216 = scalar_lea.sflag [#allocation4], %s215
        %s217 = sand.u32 %s100, 1
        %s218 = smul.addr %s217, 8
        %s219 = scalar_lea.vmem [#allocation7], %s218
        %s220 = smul.u32 2, %s27
        %s221 = smul.u32 2, %s27
        %s222 = smul.u32 2, %s27
        %s223 = smul.u32 %s27, 256
        %v224 = vlaneseq
        %v225 = vand.u32 %v224, 127
        %v226 = vadd.s32 %v225, 128
        %v227 = vstv %s223
        %v228 = vadd.s32 %v225, %v227
        %v229 = vadd.s32 %v226, %v227
        %vm230 = vcmp.lt.s32.totalorder %v228, 0
        %v231 = vsub.s32 0, %v228
        %v232 = vsel %vm230, %v231, %v228
        %v233 = vshrl.u32 %v232, 4
        %v234 = vand.u32 %v232, 15
        %v235 = vsub.s32 0, %v234
        %v236 = vsel %vm230, %v235, %v234
        %vm237 = vcmp.lt.s32.totalorder %v229, 0
        %v238 = vsub.s32 0, %v229
        %v239 = vsel %vm237, %v238, %v229
        %v240 = vshrl.u32 %v239, 4
        %v241 = vand.u32 %v239, 15
        %v242 = vsub.s32 0, %v241
        %v243 = vsel %vm237, %v242, %v241
        %vm244 = vcmp.ne.s32.totalorder %v236, 0
        %vm245 = vcmp.ne.s32.totalorder %v243, 0
        %vm246 = vcmp.lt.s32.totalorder %v236, 0
        %vm247 = vcmp.lt.s32.totalorder %v243, 0
        %vm248 = vmand %vm246, %vm244
        %vm249 = vmand %vm247, %vm245
        %v250 = vadd.s32 %v236, 16
        %v251 = vadd.s32 %v243, 16
        %v252 = vsel %vm248, %v250, %v236
        %v253 = vsel %vm249, %v251, %v243
        %v254 = vld [vmem:[%s194] sm:$0xff]
        %v255 = vld [vmem:[%s185] sm:$0xff]
        %v256 = vmul.f32 %v255, %v254
        %v258 = vcombine.high %v256, %v256
        %vm260 = vcmask 1043456
        %v261 = vsel %vm260, %v256, 0.0
        %v262 = vrot.slane %v261, 4
        %v263 = vadd.f32 %v261, %v262
        %v264 = vrot.slane %v263, 2
        %v265 = vadd.f32 %v263, %v264
        %v266 = vrot.slane %v265, 1
        %v267 = vadd.f32 %v265, %v266
        %v268 = vsel %vm260, %v258, 0.0
        %v269 = vrot.slane %v268, 4
        %v270 = vadd.f32 %v268, %v269
        %v271 = vrot.slane %v270, 2
        %v272 = vadd.f32 %v270, %v271
        %v273 = vrot.slane %v272, 1
        %v274 = vadd.f32 %v272, %v273
        %v276 = vcombine.high %v254, %v254
        %278 = vrot.lane.b32.xlu0 %v254, 1
        %v279 = vpop.permute.xlu0 %278
        %280 = vrot.lane.b32.xlu0 %v276, 1
        %v281 = vpop.permute.xlu0 %280
        %vm282 = vcmp.lt.s32.totalorder %v225, 1
        %v283 = vsel %vm282, %v279, %v281
        %v284 = vsel %vm282, %v281, %v279
        %v287 = vcombine.low %v284, %v283
        %v289 = vmul.f32 %v255, %v287
        %v291 = vcombine.high %v289, %v289
        %v293 = vsel %vm260, %v289, 0.0
        %v294 = vrot.slane %v293, 4
        %v295 = vadd.f32 %v293, %v294
        %v296 = vrot.slane %v295, 2
        %v297 = vadd.f32 %v295, %v296
        %v298 = vrot.slane %v297, 1
        %v299 = vadd.f32 %v297, %v298
        %v300 = vsel %vm260, %v291, 0.0
        %v301 = vrot.slane %v300, 4
        %v302 = vadd.f32 %v300, %v301
        %v303 = vrot.slane %v302, 2
        %v304 = vadd.f32 %v302, %v303
        %v305 = vrot.slane %v304, 1
        %v306 = vadd.f32 %v304, %v305
        %307 = vrot.lane.b32.xlu0 %v254, 2
        %v308 = vpop.permute.xlu0 %307
        %309 = vrot.lane.b32.xlu0 %v276, 2
        %v310 = vpop.permute.xlu0 %309
        %vm311 = vcmp.lt.s32.totalorder %v225, 2
        %v312 = vsel %vm311, %v308, %v310
        %v313 = vsel %vm311, %v310, %v308
        %v316 = vcombine.low %v313, %v312
        %v318 = vmul.f32 %v255, %v316
        %v320 = vcombine.high %v318, %v318
        %v322 = vsel %vm260, %v318, 0.0
        %v323 = vrot.slane %v322, 4
        %v324 = vadd.f32 %v322, %v323
        %v325 = vrot.slane %v324, 2
        %v326 = vadd.f32 %v324, %v325
        %v327 = vrot.slane %v326, 1
        %v328 = vadd.f32 %v326, %v327
        %v329 = vsel %vm260, %v320, 0.0
        %v330 = vrot.slane %v329, 4
        %v331 = vadd.f32 %v329, %v330
        %v332 = vrot.slane %v331, 2
        %v333 = vadd.f32 %v331, %v332
        %v334 = vrot.slane %v333, 1
        %v335 = vadd.f32 %v333, %v334
        %336 = vrot.lane.b32.xlu0 %v254, 3
        %v337 = vpop.permute.xlu0 %336
        %338 = vrot.lane.b32.xlu0 %v276, 3
        %v339 = vpop.permute.xlu0 %338
        %vm340 = vcmp.lt.s32.totalorder %v225, 3
        %v341 = vsel %vm340, %v337, %v339
        %v342 = vsel %vm340, %v339, %v337
        %v345 = vcombine.low %v342, %v341
        %v347 = vmul.f32 %v255, %v345
        %v349 = vcombine.high %v347, %v347
        %v351 = vsel %vm260, %v347, 0.0
        %v352 = vrot.slane %v351, 4
        %v353 = vadd.f32 %v351, %v352
        %v354 = vrot.slane %v353, 2
        %v355 = vadd.f32 %v353, %v354
        %v356 = vrot.slane %v355, 1
        %v357 = vadd.f32 %v355, %v356
        %v358 = vsel %vm260, %v349, 0.0
        %v359 = vrot.slane %v358, 4
        %v360 = vadd.f32 %v358, %v359
        %v361 = vrot.slane %v360, 2
        %v362 = vadd.f32 %v360, %v361
        %v363 = vrot.slane %v362, 1
        %v364 = vadd.f32 %v362, %v363
        %vm365 = vcmask 1040384
        %v366 = vsel %vm365, %v267, %v299
        %v367 = vsel %vm365, %v274, %v306
        %vm368 = vcmask 1041408
        %v369 = vsel %vm368, %v366, %v328
        %v370 = vsel %vm368, %v367, %v335
        %vm371 = vcmask 1042432
        %v372 = vsel %vm371, %v369, %v357
        %v373 = vsel %vm371, %v370, %v364
        %v374 = vlaneseq
        %v375 = vshrl.u32 %v374, 7
        %vm376 = vcmp.ge.s32.totalorder %v252, %v375
        %vm377 = vcmp.ge.s32.totalorder %v253, %v375
        %v378 = vsel %vm376, %v372, 0.0
        %v379 = vsel %vm377, %v373, 0.0
        %v382 = vcombine.low %v378, %v379
        %384 = vst [vmem:[%s219] sm:$0xff] %v382
        %s385 = sand.u32 %s100, 1
        %s386 = scalar_lea.sflag [#allocation4], %s385
        %s387 = sand.u32 %s100, 1
        %s388 = smul.addr %s387, 8
        %s389 = scalar_lea.vmem [#allocation7], %s388
        // Predicated region
        $region37: #{tpu_custom_call.1} parent=27 // pred_check
          %p390 = pneg %p110
        $region38: #{tpu_custom_call.1} parent=27 // pred_check_branch
          %392 = sbr.rel (%p390) target = $region40
        $region39: #{tpu_custom_call.1} parent=27 // pred_region
          %s393 = smul.u32 2, %s27
          %s395 = ssub.s32 128, 128
          %396 = vsyncadd %s386, %s395
          %s397 = smul.addr %s26, 2
          %s398 = sadd.s32 %s393, %s397
          %s399 = smul.addr %s398, 64
          %s400 = scalar_lea.hbm %s2, %s399
          %s402 = sshll.u32 %s389, 4
          %s403 = int_to_ptr.vmem [resolvable:$true] %s402
          %405 = dma.vmem_to_hbm [thread:$0]  %s403, 128, %s400, %s386
        $region40: #{tpu_custom_call.1} parent=27 // pred_fallthru
          _
      $region28: #{tpu_custom_call.1} parent=5 // pred_fallthru
        _
      %p406 = scmp.le.s32.totalorder 2, %s17
      // Predicated region
      $region41: #{tpu_custom_call.1} parent=5 // pred_check
        %p407 = pneg %p406
      $region42: #{tpu_custom_call.1} parent=5 // pred_check_branch
        %409 = sbr.rel (%p407) target = $region44
      $region43: #{tpu_custom_call.1} parent=5 // pred_region
        %s410 = ssub.s32 %s17, 2
        // Predicated region
        $region45: #{tpu_custom_call.1} parent=43 // pred_check
          %p411 = pneg %p116
        $region46: #{tpu_custom_call.1} parent=43 // pred_check_branch
          %413 = sbr.rel (%p411) target = $region48
        $region47: #{tpu_custom_call.1} parent=43 // pred_region
          %s414 = sand.u32 %s101, 1
          %s415 = scalar_lea.sflag [#allocation4], %s414
          %s416 = sand.u32 %s101, 1
          %s417 = smul.addr %s416, 8
          %s418 = scalar_lea.vmem [#allocation7], %s417
          %419 = dma.done %s415, 128
        $region48: #{tpu_custom_call.1} parent=43 // pred_fallthru
          _
      $region44: #{tpu_custom_call.1} parent=5 // pred_fallthru
        _
    $region6: #{tpu_custom_call.1} parent=1 // loop_footer
      %s21 = sadd.s32 1, %s17
    $region7: #{tpu_custom_call.1} parent=1 // loop_footer_branch
      %16 = sbr.rel target = $region3
    $region8: #{tpu_custom_call.1} parent=1 // loop_exit
      _
    %420 = vsyncpa [#allocation3], 1
    %s421 = scalar_lea.sflag [#allocation3], 1
    %422 = vsyncpa %s421, 1
    %423 = vsyncpa [#allocation6], 1
    %s424 = scalar_lea.sflag [#allocation6], 1
    %425 = vsyncpa %s424, 1
    %426 = vsyncpa [#allocation4], 1
    %s427 = scalar_lea.sflag [#allocation4], 1
    %428 = vsyncpa %s427, 1

</llo_original>
